<compile_context>
chip_gen: v7x
topology: tpu7x:2x2x1
jax: 0.10.0
libtpu: 0.0.40
codegen_flags: <defaults>
</compile_context>

<pallas_src>
import math

import jax
import jax.numpy as jnp
import numpy as np
from jax.experimental import pallas as pl
from jax.experimental.pallas import tpu as pltpu

# ---------------------------------------------------------------------------
# Hyper-params (small, consistent with the module's constructor intent)
# ---------------------------------------------------------------------------
SEQ = 8            # sequence length
BATCH = 2          # batch size
EMBED = 32         # embed_dim
HEADS = 4          # num_heads  (head_dim = 8)
FFN_HIDDEN = 64    # ffn_hidden_dim
HEAD_DIM = EMBED // HEADS
LN_EPS = 1e-5
NTOK = SEQ * BATCH           # 16 flattened tokens (row n -> batch n % BATCH)
HN = HEADS * NTOK            # 64 = head-blocked key axis

W_ROWS = EMBED + FFN_HIDDEN          # 96   packed weight/mask slab rows
W_COLS = 4 * EMBED + FFN_HIDDEN      # 192  packed weight/mask slab cols
B_ROWS = 8 * NTOK                    # 128  pre-broadcast bias slab rows
B_COLS = 3 * EMBED                   # 96   pre-broadcast bias slab cols


# ---------------------------------------------------------------------------
# Pallas kernel: full encoder layer, all batches + heads in one invocation
# ---------------------------------------------------------------------------
def encoder_layer_kernel(x_ref, w_ref, b_ref, o_ref):
    E, F, H, N = EMBED, FFN_HIDDEN, HEADS, NTOK

    x = x_ref[...]                     # (N, E) flattened tokens, row n -> batch n % B
    w = w_ref[...]                     # (96, 192) packed weights + masks
    bs = b_ref[...]                    # (128, 96) pre-broadcast bias / LN slab

    # Packed, pre-transposed weights (every matmul is x @ W; no in-kernel .T).
    w_in_t = w[0:E, 0:3 * E]           # (E, 3E)  in_proj.T (q cols pre-scaled)
    w_out_t = w[0:E, 3 * E:4 * E]      # (E, E)   out_proj.T
    w1_t = w[0:E, 4 * E:4 * E + F]     # (E, F)   ffn Linear1.T
    w2_t = w[E:E + F, 0:E]             # (F, E)   ffn Linear2.T
    hmask = w[E:E + HN, E:2 * E]       # (HN, E)  1.0 where key-block head == lane head
    mbias = w[E:E + N, 2 * E:2 * E + HN]   # (N, HN) 0 / -1e30 cross-batch mask

    # Pre-broadcast bias / LN rows (N, width) -- no in-kernel sublane broadcasts.
    b_in = bs[0 * N:1 * N, 0:3 * E]
    b_out = bs[1 * N:2 * N, 0:E]
    g1 = bs[2 * N:3 * N, 0:E]
    be1 = bs[3 * N:4 * N, 0:E]
    g2 = bs[4 * N:5 * N, 0:E]
    be2 = bs[5 * N:6 * N, 0:E]
    b1 = bs[6 * N:7 * N, 0:F]
    b2 = bs[7 * N:8 * N, 0:E]

    def layer_norm(v, g, b):
        # One-pass moments: two INDEPENDENT lane reductions (mean, mean of squares).
        mu = jnp.mean(v, axis=-1, keepdims=True)
        ms = jnp.mean(v * v, axis=-1, keepdims=True)
        return (v - mu) * jax.lax.rsqrt(ms - mu * mu + LN_EPS) * g + b

    # ---- LayerNorm1 first (is_before_norm=False) ----
    xn = layer_norm(x, g1, be1)                                             # (N, E)

    # ---- QKV projection: one matmul for all tokens / batches / heads ----
    qkv = jnp.dot(xn, w_in_t, preferred_element_type=jnp.float32) + b_in    # (N, 3E)
    q = qkv[:, 0:E]            # already scaled by 1/sqrt(head_dim)
    k = qkv[:, E:2 * E]
    v = qkv[:, 2 * E:3 * E]

    # ---- Block-diagonal multi-head attention (2-D slabs only) ----
    # kt/vt: keys/values replicated per head block along sublanes, non-head lanes zeroed.
    kt = jnp.concatenate([k] * H, axis=0) * hmask                           # (HN, E)
    vt = jnp.concatenate([v] * H, axis=0) * hmask                           # (HN, E)

    # s[n, h*N + m] = q_h[n] . k_h[m]  (masked lanes contribute 0)
    s = jnp.einsum('ne,me->nm', q, kt, preferred_element_type=jnp.float32) + mbias
    # Row-max over the full row is valid per-block (cancels in each block's softmax);
    # every row has >=1 unmasked column (its own batch), so no all--inf rows.
    p = jnp.exp(s - jnp.max(s, axis=-1, keepdims=True))                     # (N, HN)

    # Unnormalized context, heads already merged into the correct lanes.
    o_un = jnp.dot(p, vt, preferred_element_type=jnp.float32)               # (N, E)
    # Per-head softmax denominators broadcast to head lanes via one matmul.
    denom = jnp.dot(p, hmask, preferred_element_type=jnp.float32)           # (N, E)
    o = o_un * pl.reciprocal(denom, approx=True)                            # EUP slot

    attn = jnp.dot(o, w_out_t, preferred_element_type=jnp.float32) + b_out  # (N, E)

    # ---- residual + LayerNorm2 ----
    # TODO(synk): dropout layers are identity (eval mode); training-mode dropout with
    # RNG is not implemented.
    x2 = xn + attn
    x3 = layer_norm(x2, g2, be2)

    # ---- Residual FFN: relu(x3 @ W1^T + b1) @ W2^T + b2 + x3 ----
    h1 = jnp.maximum(jnp.dot(x3, w1_t, preferred_element_type=jnp.float32) + b1, 0.0)
    y = jnp.dot(h1, w2_t, preferred_element_type=jnp.float32) + b2
    o_ref[...] = (y + x3).astype(o_ref.dtype)


# ---------------------------------------------------------------------------
# Parameter / constant packing (one-time, host-side, off the hot path)
# ---------------------------------------------------------------------------
def pack_params(p):
    E, F, H, Dh, N, B = EMBED, FFN_HIDDEN, HEADS, HEAD_DIM, NTOK, BATCH
    scale = 1.0 / math.sqrt(Dh)

    w_in_t = np.asarray(p["w_in"], np.float32).T.copy()        # (E, 3E)
    w_in_t[:, :E] *= scale                                     # fold 1/sqrt(Dh) into q
    w_out_t = np.asarray(p["w_out"], np.float32).T              # (E, E)
    w1_t = np.asarray(p["w1"], np.float32).T                    # (E, F)
    w2_t = np.asarray(p["w2"], np.float32).T                    # (F, E)

    # Head-select mask: 1 where the key-block head matches the lane's head.
    hmask = (np.arange(HN)[:, None] // N ==
             np.arange(E)[None, :] // Dh).astype(np.float32)    # (HN, E)
    # Cross-batch attention bias: 0 if same batch else -1e30.
    col_tok = np.arange(HN) % N
    mbias = np.where((np.arange(N)[:, None] % B) == (col_tok[None, :] % B),
                     0.0, -1e30).astype(np.float32)             # (N, HN)

    w_slab = np.zeros((W_ROWS, W_COLS), np.float32)
    w_slab[:E, 0:3 * E] = w_in_t
    w_slab[:E, 3 * E:4 * E] = w_out_t
    w_slab[:E, 4 * E:4 * E + F] = w1_t
    w_slab[E:E + F, 0:E] = w2_t
    w_slab[E:E + HN, E:2 * E] = hmask
    w_slab[E:E + N, 2 * E:2 * E + HN] = mbias

    def bcast(vec, width):
        blk = np.zeros((N, B_COLS), np.float32)
        blk[:, :width] = np.asarray(vec, np.float32).reshape(1, -1)
        return blk

    b_in = np.asarray(p["b_in"], np.float32).reshape(-1).copy()
    b_in[:E] *= scale                                           # fold scale into q bias
    b_slab = np.concatenate([
        bcast(b_in, 3 * E),
        bcast(p["b_out"], E),
        bcast(p["g1"], E),
        bcast(p["be1"], E),
        bcast(p["g2"], E),
        bcast(p["be2"], E),
        bcast(p["b1"], F),
        bcast(p["b2"], E),
    ], axis=0)                                                  # (128, 96)

    return {"w": jnp.asarray(w_slab), "b": jnp.asarray(b_slab)}


# ---------------------------------------------------------------------------
# Wrapper: grid-less pallas_call, whole arrays in VMEM (3 input DMAs)
# ---------------------------------------------------------------------------
@jax.jit
def transformer_encoder_layer(x_sbe, packed):
    """x_sbe: (S, B, E), PyTorch nn.MultiheadAttention default layout."""
    S, B, E = x_sbe.shape
    x2d = x_sbe.reshape(S * B, E)          # contiguous reshape, no HBM transpose

    out2d = pl.pallas_call(
        encoder_layer_kernel,
        out_shape=jax.ShapeDtypeStruct((S * B, E), jnp.float32),
        in_specs=[
            pl.BlockSpec(memory_space=pltpu.MemorySpace.VMEM),   # token slab
            pl.BlockSpec(memory_space=pltpu.MemorySpace.VMEM),   # packed weights+masks
            pl.BlockSpec(memory_space=pltpu.MemorySpace.VMEM),   # pre-broadcast biases
        ],
        out_specs=pl.BlockSpec(memory_space=pltpu.MemorySpace.VMEM),
    )(x2d, packed["w"], packed["b"])

    return out2d.reshape(S, B, E)          # contiguous reshape back to (S, B, E)


# ---------------------------------------------------------------------------
# Pure-JAX reference (same math, natural PyTorch-layout params, exact softmax)
# ---------------------------------------------------------------------------
def reference(x_sbe, p):
    x = jnp.transpose(x_sbe, (1, 0, 2)).astype(jnp.float32)  # (B, S, E)

    def ln(v, g, b):
        mu = jnp.mean(v, -1, keepdims=True)
        var = jnp.mean((v - mu) ** 2, -1, keepdims=True)
        return (v - mu) * jax.lax.rsqrt(var + LN_EPS) * g + b

    xn = ln(x, p["g1"][0], p["be1"][0])
    qkv = jnp.einsum("bse,fe->bsf", xn, p["w_in"]) + p["b_in"][0]
    q, k, v = jnp.split(qkv, 3, axis=-1)

    def split_heads(t):
        B, S, _ = t.shape
        return t.reshape(B, S, HEADS, HEAD_DIM).transpose(0, 2, 1, 3)

    qh, kh, vh = split_heads(q), split_heads(k), split_heads(v)
    s = jnp.einsum("bhqd,bhkd->bhqk", qh, kh) / math.sqrt(HEAD_DIM)
    pmat = jax.nn.softmax(s, axis=-1)
    o = jnp.einsum("bhqk,bhkd->bhqd", pmat, vh)
    o = o.transpose(0, 2, 1, 3).reshape(x.shape)
    attn = jnp.einsum("bse,fe->bsf", o, p["w_out"]) + p["b_out"][0]

    x2 = xn + attn
    x3 = ln(x2, p["g2"][0], p["be2"][0])
    h1 = jax.nn.relu(jnp.einsum("bse,fe->bsf", x3, p["w1"]) + p["b1"][0])
    y = jnp.einsum("bsf,ef->bse", h1, p["w2"]) + p["b2"][0]
    out = y + x3
    return jnp.transpose(out, (1, 0, 2))


# ---------------------------------------------------------------------------
def init_params(key):
    ks = jax.random.split(key, 8)
    scale = 0.05
    return {
        "w_in": scale * jax.random.normal(ks[0], (3 * EMBED, EMBED), jnp.float32),
        "b_in": scale * jax.random.normal(ks[1], (1, 3 * EMBED), jnp.float32),
        "w_out": scale * jax.random.normal(ks[2], (EMBED, EMBED), jnp.float32),
        "b_out": scale * jax.random.normal(ks[3], (1, EMBED), jnp.float32),
        "g1": jnp.ones((1, EMBED), jnp.float32),
        "be1": jnp.zeros((1, EMBED), jnp.float32),
        "g2": jnp.ones((1, EMBED), jnp.float32),
        "be2": jnp.zeros((1, EMBED), jnp.float32),
        "w1": scale * jax.random.normal(ks[4], (FFN_HIDDEN, EMBED), jnp.float32),
        "b1": scale * jax.random.normal(ks[5], (1, FFN_HIDDEN), jnp.float32),
        "w2": scale * jax.random.normal(ks[6], (EMBED, FFN_HIDDEN), jnp.float32),
        "b2": scale * jax.random.normal(ks[7], (1, EMBED), jnp.float32),
    }


if __name__ == "__main__":
    key = jax.random.PRNGKey(0)
    kx, kp = jax.random.split(key)
    x = jax.random.normal(kx, (SEQ, BATCH, EMBED), jnp.float32)  # (S, B, E)
    params = init_params(kp)
    packed = pack_params(params)

    out = jax.block_until_ready(transformer_encoder_layer(x, packed))
    ref = jax.block_until_ready(reference(x, params))
    np.testing.assert_allclose(np.asarray(out), np.asarray(ref),
                               rtol=2e-3, atol=2e-3)

    print("KERNEL_OK")
</pallas_src>

<mosaic_0001>
module attributes {stable_mosaic.version = 11 : i64} {
  func.func @encoder_layer_kernel(%arg0: memref<16x32xf32, #tpu.memory_space<vmem>>, %arg1: memref<96x192xf32, #tpu.memory_space<vmem>>, %arg2: memref<128x96xf32, #tpu.memory_space<vmem>>, %arg3: memref<16x32xf32, #tpu.memory_space<vmem>>) attributes {dimension_semantics = [], scalar_prefetch = 0 : i64, scratch_operands = 0 : i64, tpu.core_type = #tpu.core_type<tc>} {
    %c0 = arith.constant 0 : index
    %c0_0 = arith.constant 0 : index
    %0 = vector.load %arg0[%c0, %c0_0] : memref<16x32xf32, #tpu.memory_space<vmem>>, vector<16x32xf32>
    %c0_1 = arith.constant 0 : index
    %c0_2 = arith.constant 0 : index
    %1 = vector.load %arg1[%c0_1, %c0_2] : memref<96x192xf32, #tpu.memory_space<vmem>>, vector<96x192xf32>
    %c0_3 = arith.constant 0 : index
    %c0_4 = arith.constant 0 : index
    %2 = vector.load %arg2[%c0_3, %c0_4] : memref<128x96xf32, #tpu.memory_space<vmem>>, vector<128x96xf32>
    %3 = vector.extract_strided_slice %1 {offsets = [0, 0], sizes = [32, 96], strides = [1, 1]} : vector<96x192xf32> to vector<32x96xf32>
    %4 = vector.extract_strided_slice %1 {offsets = [0, 96], sizes = [32, 32], strides = [1, 1]} : vector<96x192xf32> to vector<32x32xf32>
    %5 = vector.extract_strided_slice %1 {offsets = [0, 128], sizes = [32, 64], strides = [1, 1]} : vector<96x192xf32> to vector<32x64xf32>
    %6 = vector.extract_strided_slice %1 {offsets = [32, 0], sizes = [64, 32], strides = [1, 1]} : vector<96x192xf32> to vector<64x32xf32>
    %7 = vector.extract_strided_slice %1 {offsets = [32, 32], sizes = [64, 32], strides = [1, 1]} : vector<96x192xf32> to vector<64x32xf32>
    %8 = vector.extract_strided_slice %1 {offsets = [32, 64], sizes = [16, 64], strides = [1, 1]} : vector<96x192xf32> to vector<16x64xf32>
    %9 = vector.extract_strided_slice %2 {offsets = [0, 0], sizes = [16, 96], strides = [1, 1]} : vector<128x96xf32> to vector<16x96xf32>
    %10 = vector.extract_strided_slice %2 {offsets = [16, 0], sizes = [16, 32], strides = [1, 1]} : vector<128x96xf32> to vector<16x32xf32>
    %11 = vector.extract_strided_slice %2 {offsets = [32, 0], sizes = [16, 32], strides = [1, 1]} : vector<128x96xf32> to vector<16x32xf32>
    %12 = vector.extract_strided_slice %2 {offsets = [48, 0], sizes = [16, 32], strides = [1, 1]} : vector<128x96xf32> to vector<16x32xf32>
    %13 = vector.extract_strided_slice %2 {offsets = [64, 0], sizes = [16, 32], strides = [1, 1]} : vector<128x96xf32> to vector<16x32xf32>
    %14 = vector.extract_strided_slice %2 {offsets = [80, 0], sizes = [16, 32], strides = [1, 1]} : vector<128x96xf32> to vector<16x32xf32>
    %15 = vector.extract_strided_slice %2 {offsets = [96, 0], sizes = [16, 64], strides = [1, 1]} : vector<128x96xf32> to vector<16x64xf32>
    %16 = vector.extract_strided_slice %2 {offsets = [112, 0], sizes = [16, 32], strides = [1, 1]} : vector<128x96xf32> to vector<16x32xf32>
    %cst = arith.constant dense<0.000000e+00> : vector<16xf32>
    %17 = vector.multi_reduction <add>, %0, %cst [1] : vector<16x32xf32> to vector<16xf32>
    %18 = vector.shape_cast %17 : vector<16xf32> to vector<16x1xf32>
    %cst_5 = arith.constant 3.200000e+01 : f32
    %19 = vector.broadcast %cst_5 : f32 to vector<16x1xf32>
    %20 = arith.divf %18, %19 : vector<16x1xf32>
    %21 = arith.mulf %0, %0 : vector<16x32xf32>
    %cst_6 = arith.constant dense<0.000000e+00> : vector<16xf32>
    %22 = vector.multi_reduction <add>, %21, %cst_6 [1] : vector<16x32xf32> to vector<16xf32>
    %23 = vector.shape_cast %22 : vector<16xf32> to vector<16x1xf32>
    %cst_7 = arith.constant 3.200000e+01 : f32
    %24 = vector.broadcast %cst_7 : f32 to vector<16x1xf32>
    %25 = arith.divf %23, %24 : vector<16x1xf32>
    %26 = vector.broadcast %20 : vector<16x1xf32> to vector<16x32xf32>
    %27 = arith.subf %0, %26 : vector<16x32xf32>
    %28 = arith.mulf %20, %20 : vector<16x1xf32>
    %29 = arith.subf %25, %28 : vector<16x1xf32>
    %cst_8 = arith.constant 9.99999974E-6 : f32
    %30 = vector.broadcast %cst_8 : f32 to vector<16x1xf32>
    %31 = arith.addf %29, %30 : vector<16x1xf32>
    %32 = math.rsqrt %31 : vector<16x1xf32>
    %33 = vector.broadcast %32 : vector<16x1xf32> to vector<16x32xf32>
    %34 = arith.mulf %27, %33 : vector<16x32xf32>
    %35 = arith.mulf %34, %11 : vector<16x32xf32>
    %36 = arith.addf %35, %12 : vector<16x32xf32>
    %cst_9 = arith.constant dense<0.000000e+00> : vector<16x96xf32>
    %37 = tpu.matmul %36, %3, %cst_9 {dimension_numbers = #tpu.dot_dimension_numbers<[1], [0], [0], [1], [0, 0, 1, 1], [], []>} : vector<16x32xf32>, vector<32x96xf32>, vector<16x96xf32> -> vector<16x96xf32>
    %38 = arith.addf %37, %9 : vector<16x96xf32>
    %39 = vector.extract_strided_slice %38 {offsets = [0, 0], sizes = [16, 32], strides = [1, 1]} : vector<16x96xf32> to vector<16x32xf32>
    %40 = vector.extract_strided_slice %38 {offsets = [0, 32], sizes = [16, 32], strides = [1, 1]} : vector<16x96xf32> to vector<16x32xf32>
    %41 = vector.extract_strided_slice %38 {offsets = [0, 64], sizes = [16, 32], strides = [1, 1]} : vector<16x96xf32> to vector<16x32xf32>
    %42 = tpu.concatenate %40, %40, %40, %40 in 0 : vector<16x32xf32>, vector<16x32xf32>, vector<16x32xf32>, vector<16x32xf32> -> vector<64x32xf32>
    %43 = arith.mulf %42, %7 : vector<64x32xf32>
    %44 = tpu.concatenate %41, %41, %41, %41 in 0 : vector<16x32xf32>, vector<16x32xf32>, vector<16x32xf32>, vector<16x32xf32> -> vector<64x32xf32>
    %45 = arith.mulf %44, %7 : vector<64x32xf32>
    "tpu.trace_start"() <{level = 10 : i32, message = "ne,me->nm"}> : () -> ()
    %cst_10 = arith.constant dense<0.000000e+00> : vector<16x64xf32>
    %46 = tpu.matmul %39, %43, %cst_10 {dimension_numbers = #tpu.dot_dimension_numbers<[1], [1], [0], [0], [0, 0, 1, 0], [], []>} : vector<16x32xf32>, vector<64x32xf32>, vector<16x64xf32> -> vector<16x64xf32>
    "tpu.trace_stop"() : () -> ()
    %47 = arith.addf %46, %8 : vector<16x64xf32>
    %cst_11 = arith.constant dense<0xFF800000> : vector<16xf32>
    %48 = vector.multi_reduction <maximumf>, %47, %cst_11 [1] : vector<16x64xf32> to vector<16xf32>
    %49 = vector.shape_cast %48 : vector<16xf32> to vector<16x1xf32>
    %50 = vector.broadcast %49 : vector<16x1xf32> to vector<16x64xf32>
    %51 = arith.subf %47, %50 : vector<16x64xf32>
    %52 = math.exp %51 : vector<16x64xf32>
    %cst_12 = arith.constant dense<0.000000e+00> : vector<16x32xf32>
    %53 = tpu.matmul %52, %45, %cst_12 {dimension_numbers = #tpu.dot_dimension_numbers<[1], [0], [0], [1], [0, 0, 1, 1], [], []>} : vector<16x64xf32>, vector<64x32xf32>, vector<16x32xf32> -> vector<16x32xf32>
    %cst_13 = arith.constant dense<0.000000e+00> : vector<16x32xf32>
    %54 = tpu.matmul %52, %7, %cst_13 {dimension_numbers = #tpu.dot_dimension_numbers<[1], [0], [0], [1], [0, 0, 1, 1], [], []>} : vector<16x64xf32>, vector<64x32xf32>, vector<16x32xf32> -> vector<16x32xf32>
    %55 = tpu.reciprocal %54 {approx = true} : vector<16x32xf32> -> vector<16x32xf32>
    %56 = arith.mulf %53, %55 : vector<16x32xf32>
    %cst_14 = arith.constant dense<0.000000e+00> : vector<16x32xf32>
    %57 = tpu.matmul %56, %4, %cst_14 {dimension_numbers = #tpu.dot_dimension_numbers<[1], [0], [0], [1], [0, 0, 1, 1], [], []>} : vector<16x32xf32>, vector<32x32xf32>, vector<16x32xf32> -> vector<16x32xf32>
    %58 = arith.addf %57, %10 : vector<16x32xf32>
    %59 = arith.addf %36, %58 : vector<16x32xf32>
    %cst_15 = arith.constant dense<0.000000e+00> : vector<16xf32>
    %60 = vector.multi_reduction <add>, %59, %cst_15 [1] : vector<16x32xf32> to vector<16xf32>
    %61 = vector.shape_cast %60 : vector<16xf32> to vector<16x1xf32>
    %cst_16 = arith.constant 3.200000e+01 : f32
    %62 = vector.broadcast %cst_16 : f32 to vector<16x1xf32>
    %63 = arith.divf %61, %62 : vector<16x1xf32>
    %64 = arith.mulf %59, %59 : vector<16x32xf32>
    %cst_17 = arith.constant dense<0.000000e+00> : vector<16xf32>
    %65 = vector.multi_reduction <add>, %64, %cst_17 [1] : vector<16x32xf32> to vector<16xf32>
    %66 = vector.shape_cast %65 : vector<16xf32> to vector<16x1xf32>
    %cst_18 = arith.constant 3.200000e+01 : f32
    %67 = vector.broadcast %cst_18 : f32 to vector<16x1xf32>
    %68 = arith.divf %66, %67 : vector<16x1xf32>
    %69 = vector.broadcast %63 : vector<16x1xf32> to vector<16x32xf32>
    %70 = arith.subf %59, %69 : vector<16x32xf32>
    %71 = arith.mulf %63, %63 : vector<16x1xf32>
    %72 = arith.subf %68, %71 : vector<16x1xf32>
    %cst_19 = arith.constant 9.99999974E-6 : f32
    %73 = vector.broadcast %cst_19 : f32 to vector<16x1xf32>
    %74 = arith.addf %72, %73 : vector<16x1xf32>
    %75 = math.rsqrt %74 : vector<16x1xf32>
    %76 = vector.broadcast %75 : vector<16x1xf32> to vector<16x32xf32>
    %77 = arith.mulf %70, %76 : vector<16x32xf32>
    %78 = arith.mulf %77, %13 : vector<16x32xf32>
    %79 = arith.addf %78, %14 : vector<16x32xf32>
    %cst_20 = arith.constant dense<0.000000e+00> : vector<16x64xf32>
    %80 = tpu.matmul %79, %5, %cst_20 {dimension_numbers = #tpu.dot_dimension_numbers<[1], [0], [0], [1], [0, 0, 1, 1], [], []>} : vector<16x32xf32>, vector<32x64xf32>, vector<16x64xf32> -> vector<16x64xf32>
    %81 = arith.addf %80, %15 : vector<16x64xf32>
    %cst_21 = arith.constant 0.000000e+00 : f32
    %82 = vector.broadcast %cst_21 : f32 to vector<16x64xf32>
    %83 = arith.maximumf %81, %82 : vector<16x64xf32>
    %cst_22 = arith.constant dense<0.000000e+00> : vector<16x32xf32>
    %84 = tpu.matmul %83, %6, %cst_22 {dimension_numbers = #tpu.dot_dimension_numbers<[1], [0], [0], [1], [0, 0, 1, 1], [], []>} : vector<16x64xf32>, vector<64x32xf32>, vector<16x32xf32> -> vector<16x32xf32>
    %85 = arith.addf %84, %16 : vector<16x32xf32>
    %86 = arith.addf %85, %79 : vector<16x32xf32>
    %c0_23 = arith.constant 0 : index
    %c0_24 = arith.constant 0 : index
    %87 = vector.load %arg3[%c0_23, %c0_24] : memref<16x32xf32, #tpu.memory_space<vmem>>, vector<16x32xf32>
    tpu.vector_store %arg3[%c0_23, %c0_24], %86 {strides = array<i32>} : memref<16x32xf32, #tpu.memory_space<vmem>>, vector<16x32xf32>,
    return
  }
}

</mosaic_0001>

<llo_original>
// kernel: transformer_encoder_layer.1
$region0: #{transformer_encoder_layer.1}
  #allocation0 [shape = 'u32[]', space=smem, size = 0x4, offset = 0x4, fixed_abs, tag = 'smem constant byte address 0x4 - core index']
  #allocation1 [shape = 'u32[144,128]{1,0:T(1,128)}', space=vmem, size = 0x12000, scoped, tag = 'internal scratch']
  %s0 = inlined_call_operand.vmem [shape: f32[16,32], index: 0, kind: input, shape index: {}]
  %s1 = inlined_call_operand.vmem [shape: f32[96,192], index: 1, kind: input, shape index: {}]
  %s2 = inlined_call_operand.vmem [shape: f32[128,96], index: 2, kind: input, shape index: {}]
  %s3 = inlined_call_operand.hbm [shape: f32[16,32], index: 3, kind: output, shape index: {}]
  %s4 = sld [smem:[#allocation0]]
  $region22: #{transformer_encoder_layer.1} parent=0
    _
  %s6 = ssub.s32 1, %s4
  %s7 = scalar_select 0, %s6, %s4
  $region1: #{transformer_encoder_layer.1} parent=0
    #allocation2 [shape = 'u8[8192]{0}', space=vmem, size = 0x2000, scoped, tag = 'output window, operand 0, single buffered']
    #allocation3 [shape = 's32[1]{0}', space=sflag, size = 0x4, scoped, tag = 'scoped memory for transformer_encoder_layer.1']
    %8 = vsyncpa [#allocation3], 0
    // Predicated region
    $region2: #{transformer_encoder_layer.1} parent=1 // pred_check
      _
    $region3: #{transformer_encoder_layer.1} parent=1 // pred_check_branch
      %10 = sbr.rel (0) target = $region5
    $region4: #{transformer_encoder_layer.1} parent=1 // pred_region
      _
    $region5: #{transformer_encoder_layer.1} parent=1 // pred_fallthru
      _
    // Predicated region
    $region6: #{transformer_encoder_layer.1} parent=1 // pred_check
      _
    $region7: #{transformer_encoder_layer.1} parent=1 // pred_check_branch
      %12 = sbr.rel (0) target = $region9
    $region8: #{transformer_encoder_layer.1} parent=1 // pred_region
      _
    $region9: #{transformer_encoder_layer.1} parent=1 // pred_fallthru
      _
    // Predicated region
    $region10: #{transformer_encoder_layer.1} parent=1 // pred_check
      _
    $region11: #{transformer_encoder_layer.1} parent=1 // pred_check_branch
      %14 = sbr.rel (0) target = $region13
    $region12: #{transformer_encoder_layer.1} parent=1 // pred_region
      _
    $region13: #{transformer_encoder_layer.1} parent=1 // pred_fallthru
      _
    %v15 = vld [vmem:[%s0] sm:$0xff]
    %v16 = vld [vmem:[%s0 + $0x8] sm:$0xff]
    %v17 = vld [vmem:[%s1] sm:$0xff]
    %v18 = vld [vmem:[%s1 + $0x8] sm:$0xff]
    %v19 = vld [vmem:[%s1 + $0x10] sm:$0xff]
    %v20 = vld [vmem:[%s1 + $0x18] sm:$0xff]
    %v21 = vld [vmem:[%s1 + $0x20] sm:$0xff]
    %v22 = vld [vmem:[%s1 + $0x28] sm:$0xff]
    %v23 = vld [vmem:[%s1 + $0x30] sm:$0xff]
    %v24 = vld [vmem:[%s1 + $0x38] sm:$0xff]
    %v25 = vld [vmem:[%s1 + $0x40] sm:$0xff]
    %v26 = vld [vmem:[%s1 + $0x50] sm:$0xff]
    %v27 = vld [vmem:[%s1 + $0x60] sm:$0xff]
    %v28 = vld [vmem:[%s1 + $0x70] sm:$0xff]
    %v29 = vld [vmem:[%s1 + $0x80] sm:$0xff]
    %v30 = vld [vmem:[%s1 + $0x90] sm:$0xff]
    %v31 = vld [vmem:[%s1 + $0xa0] sm:$0xff]
    %v32 = vld [vmem:[%s1 + $0xb0] sm:$0xff]
    %v33 = vld [vmem:[%s2] sm:$0xff]
    %v34 = vld [vmem:[%s2 + $0x8] sm:$0xff]
    %v35 = vld [vmem:[%s2 + $0x10] sm:$0xff]
    %v36 = vld [vmem:[%s2 + $0x18] sm:$0xff]
    %v37 = vld [vmem:[%s2 + $0x20] sm:$0xff]
    %v38 = vld [vmem:[%s2 + $0x28] sm:$0xff]
    %v39 = vld [vmem:[%s2 + $0x30] sm:$0xff]
    %v40 = vld [vmem:[%s2 + $0x38] sm:$0xff]
    %v41 = vld [vmem:[%s2 + $0x40] sm:$0xff]
    %v42 = vld [vmem:[%s2 + $0x48] sm:$0xff]
    %v43 = vld [vmem:[%s2 + $0x50] sm:$0xff]
    %v44 = vld [vmem:[%s2 + $0x58] sm:$0xff]
    %v45 = vld [vmem:[%s2 + $0x60] sm:$0xff]
    %v46 = vld [vmem:[%s2 + $0x68] sm:$0xff]
    %v47 = vld [vmem:[%s2 + $0x70] sm:$0xff]
    %v48 = vld [vmem:[%s2 + $0x78] sm:$0xff]
    %vm49 = vcmask 261120
    %v50 = vsel %vm49, %v15, 0.0
    %51 = vadd.xlane.f32.xlu0 %v50
    %v52 = vpop.xlane.xlu0 %51
    %v53 = vsel %vm49, %v16, 0.0
    %54 = vadd.xlane.f32.xlu0 %v53
    %v55 = vpop.xlane.xlu0 %54
    %v56 = vrcp.pop 32.0
    %v57 = vmul.f32 %v52, %v56
    %v58 = vmul.f32 %v55, %v56
    %v59 = vmul.f32 %v15, %v15
    %v60 = vmul.f32 %v16, %v16
    %v61 = vsel %vm49, %v59, 0.0
    %62 = vadd.xlane.f32.xlu0 %v61
    %v63 = vpop.xlane.xlu0 %62
    %v64 = vsel %vm49, %v60, 0.0
    %65 = vadd.xlane.f32.xlu0 %v64
    %v66 = vpop.xlane.xlu0 %65
    %v67 = vmul.f32 %v63, %v56
    %v68 = vmul.f32 %v66, %v56
    %v69 = vsub.f32 %v15, %v57
    %v70 = vsub.f32 %v16, %v58
    %v71 = vmul.f32 %v57, %v57
    %v72 = vmul.f32 %v58, %v58
    %v73 = vsub.f32 %v67, %v71
    %v74 = vsub.f32 %v68, %v72
    %v75 = vadd.f32 %v73, 1e-05
    %v76 = vadd.f32 %v74, 1e-05
    %v77 = vrsqrt.pop %v75
    %v78 = vrsqrt.pop %v76
    %v79 = vmul.f32 %v69, %v77
    %v80 = vmul.f32 %v70, %v78
    %v81 = vmul.f32 %v79, %v37
    %v82 = vmul.f32 %v80, %v38
    %v83 = vadd.f32 %v81, %v39
    %v84 = vadd.f32 %v82, %v40
    %v86 = vsel %vm49, %v83, 0
    %v89 = vsel %vm49, %v84, 0
    %91 = vmatprep.subr.mxu0 0.0
    %92 = vmatpush1.msra.mxu0 %v17
    %93 = vmatprep.subr.mxu0 0.0
    %94 = vmatpush1.msra.mxu0 %v19
    %95 = vmatprep.subr.mxu0 0.0
    %96 = vmatpush1.msra.mxu0 %v21
    %97 = vmatprep.subr.mxu0 0.0
    %98 = vmatpush1.msra.mxu0 %v23
    %99 = vmatprep.subr.mxu0 0.0
    %100 = vmatpush1.msra.mxu0 0.0
    %101 = vmatprep.subr.mxu0 0.0
    %102 = vmatpush1.msra.mxu0 0.0
    %103 = vmatprep.subr.mxu0 0.0
    %104 = vmatpush1.msra.mxu0 0.0
    %105 = vmatprep.subr.mxu0 0.0
    %106 = vmatpush1.msra.mxu0 0.0
    %107 = vmatprep.subr.mxu0 0.0
    %108 = vmatpush1.msra.mxu0 0.0
    %109 = vmatprep.subr.mxu0 0.0
    %110 = vmatpush1.msra.mxu0 0.0
    %111 = vmatprep.subr.mxu0 0.0
    %112 = vmatpush1.msra.mxu0 0.0
    %113 = vmatprep.subr.mxu0 0.0
    %114 = vmatpush1.msra.mxu0 0.0
    %115 = vmatprep.subr.mxu0 0.0
    %116 = vmatpush1.msra.mxu0 0.0
    %117 = vmatprep.subr.mxu0 0.0
    %118 = vmatpush1.msra.mxu0 0.0
    %119 = vmatprep.subr.mxu0 0.0
    %120 = vmatpush1.msra.mxu0 0.0
    %121 = vmatprep.subr.mxu0 0.0
    %122 = vmatpush1.msra.mxu0 0.0
    %123 = vmatprep.subr.mxu0 0.0
    %124 = vmatpush1.msra.mxu0 0.0
    %125 = vmatprep.subr.mxu0 0.0
    %126 = vmatpush1.msra.mxu0 0.0
    %127 = vmatprep.subr.mxu0 0.0
    %128 = vmatpush1.msra.mxu0 0.0
    %129 = vmatprep.subr.mxu0 0.0
    %130 = vmatpush1.msra.mxu0 0.0
    %131 = vmatprep.subr.mxu0 0.0
    %132 = vmatpush1.msra.mxu0 0.0
    %133 = vmatprep.subr.mxu0 0.0
    %134 = vmatpush1.msra.mxu0 0.0
    %135 = vmatprep.subr.mxu0 0.0
    %136 = vmatpush1.msra.mxu0 0.0
    %137 = vmatprep.subr.mxu0 0.0
    %138 = vmatpush1.msra.mxu0 0.0
    %139 = vmatprep.subr.mxu0 0.0
    %140 = vmatpush1.msra.mxu0 0.0
    %141 = vmatprep.subr.mxu0 0.0
    %142 = vmatpush1.msra.mxu0 0.0
    %143 = vmatprep.subr.mxu0 0.0
    %144 = vmatpush1.msra.mxu0 0.0
    %145 = vmatprep.subr.mxu0 0.0
    %146 = vmatpush1.msra.mxu0 0.0
    %147 = vmatprep.subr.mxu0 0.0
    %148 = vmatpush1.msra.mxu0 0.0
    %149 = vmatprep.subr.mxu0 0.0
    %150 = vmatpush1.msra.mxu0 0.0
    %151 = vmatprep.subr.mxu0 0.0
    %152 = vmatpush1.msra.mxu0 0.0
    %153 = vmatprep.subr.mxu0 0.0
    %154 = vmatpush1.msra.mxu0 0.0
    %155 = vmatprep.mubr.f32.mxu0 0.0
    %156 = vmatmul.mubr.f32.gmra.mrb[0].mxu0 %v86
    %v157 = vpop.f32.mrb[0].mxu0
    %v158 = vadd.f32 %v33, %v157
    %v159 = vpop.f32.mrb[0].mxu0
    %160 = vmatprep.mubr.f32.mxu0 0.0
    %161 = vmatmul.mubr.f32.gmra.mrb[0].mxu0 %v89
    %v162 = vpop.f32.mrb[0].mxu0
    %v163 = vadd.f32 %v34, %v162
    %v164 = vpop.f32.mrb[0].mxu0
    %165 = vdwg.mxu0
    %v166 = vmul.f32 %v158, %v25
    %v167 = vmul.f32 %v163, %v26
    %v168 = vmul.f32 %v158, %v27
    %v169 = vmul.f32 %v163, %v28
    %v170 = vmul.f32 %v158, %v29
    %v171 = vmul.f32 %v163, %v30
    %v172 = vmul.f32 %v158, %v31
    %v173 = vmul.f32 %v163, %v32
    %182 = vrot.lane.b32.xlu0 %v25, 32
    %v183 = vpop.permute.xlu0 %182
    %184 = vrot.lane.b32.xlu0 %v26, 32
    %v185 = vpop.permute.xlu0 %184
    %186 = vrot.lane.b32.xlu0 %v27, 32
    %v187 = vpop.permute.xlu0 %186
    %188 = vrot.lane.b32.xlu0 %v28, 32
    %v189 = vpop.permute.xlu0 %188
    %190 = vrot.lane.b32.xlu0 %v29, 32
    %v191 = vpop.permute.xlu0 %190
    %192 = vrot.lane.b32.xlu0 %v30, 32
    %v193 = vpop.permute.xlu0 %192
    %194 = vrot.lane.b32.xlu0 %v31, 32
    %v195 = vpop.permute.xlu0 %194
    %196 = vrot.lane.b32.xlu0 %v32, 32
    %v197 = vpop.permute.xlu0 %196
    %v206 = vmul.f32 %v158, %v183
    %v207 = vmul.f32 %v163, %v185
    %v208 = vmul.f32 %v158, %v187
    %v209 = vmul.f32 %v163, %v189
    %v210 = vmul.f32 %v158, %v191
    %v211 = vmul.f32 %v163, %v193
    %v212 = vmul.f32 %v158, %v195
    %v213 = vmul.f32 %v163, %v197
    %222 = vrot.lane.b32.xlu0 %v166, 96
    %v223 = vpop.permute.xlu0 %222
    %224 = vrot.lane.b32.xlu0 %v167, 96
    %v225 = vpop.permute.xlu0 %224
    %226 = vrot.lane.b32.xlu0 %v168, 96
    %v227 = vpop.permute.xlu0 %226
    %228 = vrot.lane.b32.xlu0 %v169, 96
    %v229 = vpop.permute.xlu0 %228
    %230 = vrot.lane.b32.xlu0 %v170, 96
    %v231 = vpop.permute.xlu0 %230
    %232 = vrot.lane.b32.xlu0 %v171, 96
    %v233 = vpop.permute.xlu0 %232
    %234 = vrot.lane.b32.xlu0 %v172, 96
    %v235 = vpop.permute.xlu0 %234
    %236 = vrot.lane.b32.xlu0 %v173, 96
    %v237 = vpop.permute.xlu0 %236
    %238 = vrot.lane.b32.xlu0 %v25, 64
    %v239 = vpop.permute.xlu0 %238
    %240 = vrot.lane.b32.xlu0 %v26, 64
    %v241 = vpop.permute.xlu0 %240
    %v245 = vsel %vm49, %v158, 0
    %v248 = vsel %vm49, %v163, 0
    %v250 = vsel %vm49, %v223, 0
    %v252 = vsel %vm49, %v225, 0
    %v254 = vsel %vm49, %v227, 0
    %v256 = vsel %vm49, %v229, 0
    %v258 = vsel %vm49, %v231, 0
    %v260 = vsel %vm49, %v233, 0
    %v262 = vsel %vm49, %v235, 0
    %v264 = vsel %vm49, %v237, 0
    %266 = vmatprep.subr.mxu0 0.0
    %267 = vmatpush1.xpose.msra.mxu0 %v250
    %268 = vmatprep.subr.mxu0 0.0
    %269 = vmatpush1.xpose.msra.mxu0 %v252
    %270 = vmatprep.subr.mxu0 0.0
    %271 = vmatpush1.xpose.msra.mxu0 %v254
    %272 = vmatprep.subr.mxu0 0.0
    %273 = vmatpush1.xpose.msra.mxu0 %v256
    %274 = vmatprep.subr.mxu0 0.0
    %275 = vmatpush1.xpose.msra.mxu0 %v258
    %276 = vmatprep.subr.mxu0 0.0
    %277 = vmatpush1.xpose.msra.mxu0 %v260
    %278 = vmatprep.subr.mxu0 0.0
    %279 = vmatpush1.xpose.msra.mxu0 %v262
    %280 = vmatprep.subr.mxu0 0.0
    %281 = vmatpush1.xpose.msra.mxu0 %v264
    %282 = vmatprep.subr.mxu0 0.0
    %283 = vmatpush1.xpose.msra.mxu0 0.0
    %284 = vmatprep.subr.mxu0 0.0
    %285 = vmatpush1.xpose.msra.mxu0 0.0
    %286 = vmatprep.subr.mxu0 0.0
    %287 = vmatpush1.xpose.msra.mxu0 0.0
    %288 = vmatprep.subr.mxu0 0.0
    %289 = vmatpush1.xpose.msra.mxu0 0.0
    %290 = vmatprep.subr.mxu0 0.0
    %291 = vmatpush1.xpose.msra.mxu0 0.0
    %292 = vmatprep.subr.mxu0 0.0
    %293 = vmatpush1.xpose.msra.mxu0 0.0
    %294 = vmatprep.subr.mxu0 0.0
    %295 = vmatpush1.xpose.msra.mxu0 0.0
    %296 = vmatprep.subr.mxu0 0.0
    %297 = vmatpush1.xpose.msra.mxu0 0.0
    %298 = vmatprep.subr.mxu0 0.0
    %299 = vmatpush1.xpose.msra.mxu0 0.0
    %300 = vmatprep.subr.mxu0 0.0
    %301 = vmatpush1.xpose.msra.mxu0 0.0
    %302 = vmatprep.subr.mxu0 0.0
    %303 = vmatpush1.xpose.msra.mxu0 0.0
    %304 = vmatprep.subr.mxu0 0.0
    %305 = vmatpush1.xpose.msra.mxu0 0.0
    %306 = vmatprep.subr.mxu0 0.0
    %307 = vmatpush1.xpose.msra.mxu0 0.0
    %308 = vmatprep.subr.mxu0 0.0
    %309 = vmatpush1.xpose.msra.mxu0 0.0
    %310 = vmatprep.subr.mxu0 0.0
    %311 = vmatpush1.xpose.msra.mxu0 0.0
    %312 = vmatprep.subr.mxu0 0.0
    %313 = vmatpush1.xpose.msra.mxu0 0.0
    %314 = vmatprep.subr.mxu0 0.0
    %315 = vmatpush1.xpose.msra.mxu0 0.0
    %316 = vmatprep.subr.mxu0 0.0
    %317 = vmatpush1.xpose.msra.mxu0 0.0
    %318 = vmatprep.subr.mxu0 0.0
    %319 = vmatpush1.xpose.msra.mxu0 0.0
    %320 = vmatprep.subr.mxu0 0.0
    %321 = vmatpush1.xpose.msra.mxu0 0.0
    %322 = vmatprep.subr.mxu0 0.0
    %323 = vmatpush1.xpose.msra.mxu0 0.0
    %324 = vmatprep.subr.mxu0 0.0
    %325 = vmatpush1.xpose.msra.mxu0 0.0
    %326 = vmatprep.subr.mxu0 0.0
    %327 = vmatpush1.xpose.msra.mxu0 0.0
    %328 = vmatprep.subr.mxu0 0.0
    %329 = vmatpush1.xpose.msra.mxu0 0.0
    %330 = vmatprep.mubr.f32.mxu0 0.0
    %331 = vmatmul.mubr.f32.gmra.mrb[0].mxu0 %v245
    %v332 = vpop.f32.mrb[0].mxu0
    %v333 = vadd.f32 %v239, %v332
    %v334 = vpop.f32.mrb[0].mxu0
    %335 = vmatprep.mubr.f32.mxu0 0.0
    %336 = vmatmul.mubr.f32.gmra.mrb[0].mxu0 %v248
    %v337 = vpop.f32.mrb[0].mxu0
    %v338 = vadd.f32 %v241, %v337
    %v339 = vpop.f32.mrb[0].mxu0
    %340 = vdwg.mxu0
    %vm341 = vcmask 523264
    %v342 = vsel %vm341, %v333, -inf
    %343 = vmax.xlane.f32.xlu0 %v342
    %v344 = vpop.xlane.xlu0 %343
    %v345 = vsel %vm341, %v338, -inf
    %346 = vmax.xlane.f32.xlu0 %v345
    %v347 = vpop.xlane.xlu0 %346
    %v348 = vsub.f32 %v333, %v344
    %v349 = vsub.f32 %v338, %v347
    %v350 = vmul.f32 %v348, 1.442695
    %v351 = vpow.pop %v350
    %v352 = vmul.f32 %v349, 1.442695
    %v353 = vpow.pop %v352
    %362 = vrot.lane.b32.xlu0 %v206, 64
    %v363 = vpop.permute.xlu0 %362
    %364 = vrot.lane.b32.xlu0 %v207, 64
    %v365 = vpop.permute.xlu0 %364
    %366 = vrot.lane.b32.xlu0 %v208, 64
    %v367 = vpop.permute.xlu0 %366
    %368 = vrot.lane.b32.xlu0 %v209, 64
    %v369 = vpop.permute.xlu0 %368
    %370 = vrot.lane.b32.xlu0 %v210, 64
    %v371 = vpop.permute.xlu0 %370
    %372 = vrot.lane.b32.xlu0 %v211, 64
    %v373 = vpop.permute.xlu0 %372
    %374 = vrot.lane.b32.xlu0 %v212, 64
    %v375 = vpop.permute.xlu0 %374
    %376 = vrot.lane.b32.xlu0 %v213, 64
    %v377 = vpop.permute.xlu0 %376
    %v387 = vsel %vm341, %v351, 0
    %v390 = vsel %vm341, %v353, 0
    %392 = vmatprep.subr.mxu0 0.0
    %393 = vmatpush1.msra.mxu0 %v363
    %394 = vmatprep.subr.mxu0 0.0
    %395 = vmatpush1.msra.mxu0 %v365
    %396 = vmatprep.subr.mxu0 0.0
    %397 = vmatpush1.msra.mxu0 %v367
    %398 = vmatprep.subr.mxu0 0.0
    %399 = vmatpush1.msra.mxu0 %v369
    %400 = vmatprep.subr.mxu0 0.0
    %401 = vmatpush1.msra.mxu0 %v371
    %402 = vmatprep.subr.mxu0 0.0
    %403 = vmatpush1.msra.mxu0 %v373
    %404 = vmatprep.subr.mxu0 0.0
    %405 = vmatpush1.msra.mxu0 %v375
    %406 = vmatprep.subr.mxu0 0.0
    %407 = vmatpush1.msra.mxu0 %v377
    %408 = vmatprep.subr.mxu0 0.0
    %409 = vmatpush1.msra.mxu0 0.0
    %410 = vmatprep.subr.mxu0 0.0
    %411 = vmatpush1.msra.mxu0 0.0
    %412 = vmatprep.subr.mxu0 0.0
    %413 = vmatpush1.msra.mxu0 0.0
    %414 = vmatprep.subr.mxu0 0.0
    %415 = vmatpush1.msra.mxu0 0.0
    %416 = vmatprep.subr.mxu0 0.0
    %417 = vmatpush1.msra.mxu0 0.0
    %418 = vmatprep.subr.mxu0 0.0
    %419 = vmatpush1.msra.mxu0 0.0
    %420 = vmatprep.subr.mxu0 0.0
    %421 = vmatpush1.msra.mxu0 0.0
    %422 = vmatprep.subr.mxu0 0.0
    %423 = vmatpush1.msra.mxu0 0.0
    %424 = vmatprep.subr.mxu0 0.0
    %425 = vmatpush1.msra.mxu0 0.0
    %426 = vmatprep.subr.mxu0 0.0
    %427 = vmatpush1.msra.mxu0 0.0
    %428 = vmatprep.subr.mxu0 0.0
    %429 = vmatpush1.msra.mxu0 0.0
    %430 = vmatprep.subr.mxu0 0.0
    %431 = vmatpush1.msra.mxu0 0.0
    %432 = vmatprep.subr.mxu0 0.0
    %433 = vmatpush1.msra.mxu0 0.0
    %434 = vmatprep.subr.mxu0 0.0
    %435 = vmatpush1.msra.mxu0 0.0
    %436 = vmatprep.subr.mxu0 0.0
    %437 = vmatpush1.msra.mxu0 0.0
    %438 = vmatprep.subr.mxu0 0.0
    %439 = vmatpush1.msra.mxu0 0.0
    %440 = vmatprep.subr.mxu0 0.0
    %441 = vmatpush1.msra.mxu0 0.0
    %442 = vmatprep.subr.mxu0 0.0
    %443 = vmatpush1.msra.mxu0 0.0
    %444 = vmatprep.subr.mxu0 0.0
    %445 = vmatpush1.msra.mxu0 0.0
    %446 = vmatprep.subr.mxu0 0.0
    %447 = vmatpush1.msra.mxu0 0.0
    %448 = vmatprep.subr.mxu0 0.0
    %449 = vmatpush1.msra.mxu0 0.0
    %450 = vmatprep.subr.mxu0 0.0
    %451 = vmatpush1.msra.mxu0 0.0
    %452 = vmatprep.subr.mxu0 0.0
    %453 = vmatpush1.msra.mxu0 0.0
    %454 = vmatprep.subr.mxu0 0.0
    %455 = vmatpush1.msra.mxu0 0.0
    %456 = vmatprep.mubr.f32.mxu0 0.0
    %457 = vmatmul.mubr.f32.gmra.mrb[0].mxu0 %v387
    %v458 = vpop.f32.mrb[0].mxu0
    %v459 = vadd.f32 0.0, %v458
    %v460 = vpop.f32.mrb[0].mxu0
    %461 = vmatprep.mubr.f32.mxu0 0.0
    %462 = vmatmul.mubr.f32.gmra.mrb[0].mxu0 %v390
    %v463 = vpop.f32.mrb[0].mxu0
    %v464 = vadd.f32 0.0, %v463
    %v465 = vpop.f32.mrb[0].mxu0
    %466 = vdwg.mxu0
    %467 = vrot.lane.b32.xlu0 %v25, 96
    %v468 = vpop.permute.xlu0 %467
    %469 = vrot.lane.b32.xlu0 %v26, 96
    %v470 = vpop.permute.xlu0 %469
    %471 = vrot.lane.b32.xlu0 %v27, 96
    %v472 = vpop.permute.xlu0 %471
    %473 = vrot.lane.b32.xlu0 %v28, 96
    %v474 = vpop.permute.xlu0 %473
    %475 = vrot.lane.b32.xlu0 %v29, 96
    %v476 = vpop.permute.xlu0 %475
    %477 = vrot.lane.b32.xlu0 %v30, 96
    %v478 = vpop.permute.xlu0 %477
    %479 = vrot.lane.b32.xlu0 %v31, 96
    %v480 = vpop.permute.xlu0 %479
    %481 = vrot.lane.b32.xlu0 %v32, 96
    %v482 = vpop.permute.xlu0 %481
    %491 = vmatprep.subr.mxu0 0.0
    %492 = vmatpush1.msra.mxu0 %v468
    %493 = vmatprep.subr.mxu0 0.0
    %494 = vmatpush1.msra.mxu0 %v470
    %495 = vmatprep.subr.mxu0 0.0
    %496 = vmatpush1.msra.mxu0 %v472
    %497 = vmatprep.subr.mxu0 0.0
    %498 = vmatpush1.msra.mxu0 %v474
    %499 = vmatprep.subr.mxu0 0.0
    %500 = vmatpush1.msra.mxu0 %v476
    %501 = vmatprep.subr.mxu0 0.0
    %502 = vmatpush1.msra.mxu0 %v478
    %503 = vmatprep.subr.mxu0 0.0
    %504 = vmatpush1.msra.mxu0 %v480
    %505 = vmatprep.subr.mxu0 0.0
    %506 = vmatpush1.msra.mxu0 %v482
    %507 = vmatprep.subr.mxu0 0.0
    %508 = vmatpush1.msra.mxu0 0.0
    %509 = vmatprep.subr.mxu0 0.0
    %510 = vmatpush1.msra.mxu0 0.0
    %511 = vmatprep.subr.mxu0 0.0
    %512 = vmatpush1.msra.mxu0 0.0
    %513 = vmatprep.subr.mxu0 0.0
    %514 = vmatpush1.msra.mxu0 0.0
    %515 = vmatprep.subr.mxu0 0.0
    %516 = vmatpush1.msra.mxu0 0.0
    %517 = vmatprep.subr.mxu0 0.0
    %518 = vmatpush1.msra.mxu0 0.0
    %519 = vmatprep.subr.mxu0 0.0
    %520 = vmatpush1.msra.mxu0 0.0
    %521 = vmatprep.subr.mxu0 0.0
    %522 = vmatpush1.msra.mxu0 0.0
    %523 = vmatprep.subr.mxu0 0.0
    %524 = vmatpush1.msra.mxu0 0.0
    %525 = vmatprep.subr.mxu0 0.0
    %526 = vmatpush1.msra.mxu0 0.0
    %527 = vmatprep.subr.mxu0 0.0
    %528 = vmatpush1.msra.mxu0 0.0
    %529 = vmatprep.subr.mxu0 0.0
    %530 = vmatpush1.msra.mxu0 0.0
    %531 = vmatprep.subr.mxu0 0.0
    %532 = vmatpush1.msra.mxu0 0.0
    %533 = vmatprep.subr.mxu0 0.0
    %534 = vmatpush1.msra.mxu0 0.0
    %535 = vmatprep.subr.mxu0 0.0
    %536 = vmatpush1.msra.mxu0 0.0
    %537 = vmatprep.subr.mxu0 0.0
    %538 = vmatpush1.msra.mxu0 0.0
    %539 = vmatprep.subr.mxu0 0.0
    %540 = vmatpush1.msra.mxu0 0.0
    %541 = vmatprep.subr.mxu0 0.0
    %542 = vmatpush1.msra.mxu0 0.0
    %543 = vmatprep.subr.mxu0 0.0
    %544 = vmatpush1.msra.mxu0 0.0
    %545 = vmatprep.subr.mxu0 0.0
    %546 = vmatpush1.msra.mxu0 0.0
    %547 = vmatprep.subr.mxu0 0.0
    %548 = vmatpush1.msra.mxu0 0.0
    %549 = vmatprep.subr.mxu0 0.0
    %550 = vmatpush1.msra.mxu0 0.0
    %551 = vmatprep.subr.mxu0 0.0
    %552 = vmatpush1.msra.mxu0 0.0
    %553 = vmatprep.subr.mxu0 0.0
    %554 = vmatpush1.msra.mxu0 0.0
    %555 = vmatprep.mubr.f32.mxu0 0.0
    %556 = vmatmul.mubr.f32.gmra.mrb[0].mxu0 %v387
    %v557 = vpop.f32.mrb[0].mxu0
    %v558 = vadd.f32 0.0, %v557
    %v559 = vpop.f32.mrb[0].mxu0
    %560 = vmatprep.mubr.f32.mxu0 0.0
    %561 = vmatmul.mubr.f32.gmra.mrb[0].mxu0 %v390
    %v562 = vpop.f32.mrb[0].mxu0
    %v563 = vadd.f32 0.0, %v562
    %v564 = vpop.f32.mrb[0].mxu0
    %565 = vdwg.mxu0
    %v566 = vrcp.pop %v558
    %v567 = vrcp.pop %v563
    %v568 = vmul.f32 %v459, %v566
    %v569 = vmul.f32 %v464, %v567
    %574 = vrot.lane.b32.xlu0 %v17, 32
    %v575 = vpop.permute.xlu0 %574
    %576 = vrot.lane.b32.xlu0 %v19, 32
    %v577 = vpop.permute.xlu0 %576
    %578 = vrot.lane.b32.xlu0 %v21, 32
    %v579 = vpop.permute.xlu0 %578
    %580 = vrot.lane.b32.xlu0 %v23, 32
    %v581 = vpop.permute.xlu0 %580
    %v587 = vsel %vm49, %v568, 0
    %v590 = vsel %vm49, %v569, 0
    %592 = vmatprep.subr.mxu0 0.0
    %593 = vmatpush1.msra.mxu0 %v575
    %594 = vmatprep.subr.mxu0 0.0
    %595 = vmatpush1.msra.mxu0 %v577
    %596 = vmatprep.subr.mxu0 0.0
    %597 = vmatpush1.msra.mxu0 %v579
    %598 = vmatprep.subr.mxu0 0.0
    %599 = vmatpush1.msra.mxu0 %v581
    %600 = vmatprep.subr.mxu0 0.0
    %601 = vmatpush1.msra.mxu0 0.0
    %602 = vmatprep.subr.mxu0 0.0
    %603 = vmatpush1.msra.mxu0 0.0
    %604 = vmatprep.subr.mxu0 0.0
    %605 = vmatpush1.msra.mxu0 0.0
    %606 = vmatprep.subr.mxu0 0.0
    %607 = vmatpush1.msra.mxu0 0.0
    %608 = vmatprep.subr.mxu0 0.0
    %609 = vmatpush1.msra.mxu0 0.0
    %610 = vmatprep.subr.mxu0 0.0
    %611 = vmatpush1.msra.mxu0 0.0
    %612 = vmatprep.subr.mxu0 0.0
    %613 = vmatpush1.msra.mxu0 0.0
    %614 = vmatprep.subr.mxu0 0.0
    %615 = vmatpush1.msra.mxu0 0.0
    %616 = vmatprep.subr.mxu0 0.0
    %617 = vmatpush1.msra.mxu0 0.0
    %618 = vmatprep.subr.mxu0 0.0
    %619 = vmatpush1.msra.mxu0 0.0
    %620 = vmatprep.subr.mxu0 0.0
    %621 = vmatpush1.msra.mxu0 0.0
    %622 = vmatprep.subr.mxu0 0.0
    %623 = vmatpush1.msra.mxu0 0.0
    %624 = vmatprep.subr.mxu0 0.0
    %625 = vmatpush1.msra.mxu0 0.0
    %626 = vmatprep.subr.mxu0 0.0
    %627 = vmatpush1.msra.mxu0 0.0
    %628 = vmatprep.subr.mxu0 0.0
    %629 = vmatpush1.msra.mxu0 0.0
    %630 = vmatprep.subr.mxu0 0.0
    %631 = vmatpush1.msra.mxu0 0.0
    %632 = vmatprep.subr.mxu0 0.0
    %633 = vmatpush1.msra.mxu0 0.0
    %634 = vmatprep.subr.mxu0 0.0
    %635 = vmatpush1.msra.mxu0 0.0
    %636 = vmatprep.subr.mxu0 0.0
    %637 = vmatpush1.msra.mxu0 0.0
    %638 = vmatprep.subr.mxu0 0.0
    %639 = vmatpush1.msra.mxu0 0.0
    %640 = vmatprep.subr.mxu0 0.0
    %641 = vmatpush1.msra.mxu0 0.0
    %642 = vmatprep.subr.mxu0 0.0
    %643 = vmatpush1.msra.mxu0 0.0
    %644 = vmatprep.subr.mxu0 0.0
    %645 = vmatpush1.msra.mxu0 0.0
    %646 = vmatprep.subr.mxu0 0.0
    %647 = vmatpush1.msra.mxu0 0.0
    %648 = vmatprep.subr.mxu0 0.0
    %649 = vmatpush1.msra.mxu0 0.0
    %650 = vmatprep.subr.mxu0 0.0
    %651 = vmatpush1.msra.mxu0 0.0
    %652 = vmatprep.subr.mxu0 0.0
    %653 = vmatpush1.msra.mxu0 0.0
    %654 = vmatprep.subr.mxu0 0.0
    %655 = vmatpush1.msra.mxu0 0.0
    %656 = vmatprep.mubr.f32.mxu0 0.0
    %657 = vmatmul.mubr.f32.gmra.mrb[0].mxu0 %v587
    %v658 = vpop.f32.mrb[0].mxu0
    %v659 = vadd.f32 %v35, %v658
    %v660 = vpop.f32.mrb[0].mxu0
    %661 = vmatprep.mubr.f32.mxu0 0.0
    %662 = vmatmul.mubr.f32.gmra.mrb[0].mxu0 %v590
    %v663 = vpop.f32.mrb[0].mxu0
    %v664 = vadd.f32 %v36, %v663
    %v665 = vpop.f32.mrb[0].mxu0
    %666 = vdwg.mxu0
    %v667 = vadd.f32 %v83, %v659
    %v668 = vadd.f32 %v84, %v664
    %v669 = vsel %vm49, %v667, 0.0
    %670 = vadd.xlane.f32.xlu0 %v669
    %v671 = vpop.xlane.xlu0 %670
    %v672 = vsel %vm49, %v668, 0.0
    %673 = vadd.xlane.f32.xlu0 %v672
    %v674 = vpop.xlane.xlu0 %673
    %v675 = vmul.f32 %v671, %v56
    %v676 = vmul.f32 %v674, %v56
    %v677 = vmul.f32 %v667, %v667
    %v678 = vmul.f32 %v668, %v668
    %v679 = vsel %vm49, %v677, 0.0
    %680 = vadd.xlane.f32.xlu0 %v679
    %v681 = vpop.xlane.xlu0 %680
    %v682 = vsel %vm49, %v678, 0.0
    %683 = vadd.xlane.f32.xlu0 %v682
    %v684 = vpop.xlane.xlu0 %683
    %v685 = vmul.f32 %v681, %v56
    %v686 = vmul.f32 %v684, %v56
    %v687 = vsub.f32 %v667, %v675
    %v688 = vsub.f32 %v668, %v676
    %v689 = vmul.f32 %v675, %v675
    %v690 = vmul.f32 %v676, %v676
    %v691 = vsub.f32 %v685, %v689
    %v692 = vsub.f32 %v686, %v690
    %v693 = vadd.f32 %v691, 1e-05
    %v694 = vadd.f32 %v692, 1e-05
    %v695 = vrsqrt.pop %v693
    %v696 = vrsqrt.pop %v694
    %v697 = vmul.f32 %v687, %v695
    %v698 = vmul.f32 %v688, %v696
    %v699 = vmul.f32 %v697, %v41
    %v700 = vmul.f32 %v698, %v42
    %v701 = vadd.f32 %v699, %v43
    %v702 = vadd.f32 %v700, %v44
    %v704 = vsel %vm49, %v701, 0
    %v707 = vsel %vm49, %v702, 0
    %709 = vmatprep.subr.mxu0 0.0
    %710 = vmatpush1.msra.mxu0 %v18
    %711 = vmatprep.subr.mxu0 0.0
    %712 = vmatpush1.msra.mxu0 %v20
    %713 = vmatprep.subr.mxu0 0.0
    %714 = vmatpush1.msra.mxu0 %v22
    %715 = vmatprep.subr.mxu0 0.0
    %716 = vmatpush1.msra.mxu0 %v24
    %717 = vmatprep.subr.mxu0 0.0
    %718 = vmatpush1.msra.mxu0 0.0
    %719 = vmatprep.subr.mxu0 0.0
    %720 = vmatpush1.msra.mxu0 0.0
    %721 = vmatprep.subr.mxu0 0.0
    %722 = vmatpush1.msra.mxu0 0.0
    %723 = vmatprep.subr.mxu0 0.0
    %724 = vmatpush1.msra.mxu0 0.0
    %725 = vmatprep.subr.mxu0 0.0
    %726 = vmatpush1.msra.mxu0 0.0
    %727 = vmatprep.subr.mxu0 0.0
    %728 = vmatpush1.msra.mxu0 0.0
    %729 = vmatprep.subr.mxu0 0.0
    %730 = vmatpush1.msra.mxu0 0.0
    %731 = vmatprep.subr.mxu0 0.0
    %732 = vmatpush1.msra.mxu0 0.0
    %733 = vmatprep.subr.mxu0 0.0
    %734 = vmatpush1.msra.mxu0 0.0
    %735 = vmatprep.subr.mxu0 0.0
    %736 = vmatpush1.msra.mxu0 0.0
    %737 = vmatprep.subr.mxu0 0.0
    %738 = vmatpush1.msra.mxu0 0.0
    %739 = vmatprep.subr.mxu0 0.0
    %740 = vmatpush1.msra.mxu0 0.0
    %741 = vmatprep.subr.mxu0 0.0
    %742 = vmatpush1.msra.mxu0 0.0
    %743 = vmatprep.subr.mxu0 0.0
    %744 = vmatpush1.msra.mxu0 0.0
    %745 = vmatprep.subr.mxu0 0.0
    %746 = vmatpush1.msra.mxu0 0.0
    %747 = vmatprep.subr.mxu0 0.0
    %748 = vmatpush1.msra.mxu0 0.0
    %749 = vmatprep.subr.mxu0 0.0
    %750 = vmatpush1.msra.mxu0 0.0
    %751 = vmatprep.subr.mxu0 0.0
    %752 = vmatpush1.msra.mxu0 0.0
    %753 = vmatprep.subr.mxu0 0.0
    %754 = vmatpush1.msra.mxu0 0.0
    %755 = vmatprep.subr.mxu0 0.0
    %756 = vmatpush1.msra.mxu0 0.0
    %757 = vmatprep.subr.mxu0 0.0
    %758 = vmatpush1.msra.mxu0 0.0
    %759 = vmatprep.subr.mxu0 0.0
    %760 = vmatpush1.msra.mxu0 0.0
    %761 = vmatprep.subr.mxu0 0.0
    %762 = vmatpush1.msra.mxu0 0.0
    %763 = vmatprep.subr.mxu0 0.0
    %764 = vmatpush1.msra.mxu0 0.0
    %765 = vmatprep.subr.mxu0 0.0
    %766 = vmatpush1.msra.mxu0 0.0
    %767 = vmatprep.subr.mxu0 0.0
    %768 = vmatpush1.msra.mxu0 0.0
    %769 = vmatprep.subr.mxu0 0.0
    %770 = vmatpush1.msra.mxu0 0.0
    %771 = vmatprep.subr.mxu0 0.0
    %772 = vmatpush1.msra.mxu0 0.0
    %773 = vmatprep.mubr.f32.mxu0 0.0
    %774 = vmatmul.mubr.f32.gmra.mrb[0].mxu0 %v704
    %v775 = vpop.f32.mrb[0].mxu0
    %v776 = vadd.f32 %v45, %v775
    %v777 = vpop.f32.mrb[0].mxu0
    %778 = vmatprep.mubr.f32.mxu0 0.0
    %779 = vmatmul.mubr.f32.gmra.mrb[0].mxu0 %v707
    %v780 = vpop.f32.mrb[0].mxu0
    %v781 = vadd.f32 %v46, %v780
    %v782 = vpop.f32.mrb[0].mxu0
    %783 = vdwg.mxu0
    %v784 = vmax.f32 %v776, 0.0
    %v785 = vmax.f32 %v781, 0.0
    %v787 = vsel %vm341, %v784, 0
    %v790 = vsel %vm341, %v785, 0
    %792 = vmatprep.subr.mxu0 0.0
    %793 = vmatpush1.msra.mxu0 %v25
    %794 = vmatprep.subr.mxu0 0.0
    %795 = vmatpush1.msra.mxu0 %v26
    %796 = vmatprep.subr.mxu0 0.0
    %797 = vmatpush1.msra.mxu0 %v27
    %798 = vmatprep.subr.mxu0 0.0
    %799 = vmatpush1.msra.mxu0 %v28
    %800 = vmatprep.subr.mxu0 0.0
    %801 = vmatpush1.msra.mxu0 %v29
    %802 = vmatprep.subr.mxu0 0.0
    %803 = vmatpush1.msra.mxu0 %v30
    %804 = vmatprep.subr.mxu0 0.0
    %805 = vmatpush1.msra.mxu0 %v31
    %806 = vmatprep.subr.mxu0 0.0
    %807 = vmatpush1.msra.mxu0 %v32
    %808 = vmatprep.subr.mxu0 0.0
    %809 = vmatpush1.msra.mxu0 0.0
    %810 = vmatprep.subr.mxu0 0.0
    %811 = vmatpush1.msra.mxu0 0.0
    %812 = vmatprep.subr.mxu0 0.0
    %813 = vmatpush1.msra.mxu0 0.0
    %814 = vmatprep.subr.mxu0 0.0
    %815 = vmatpush1.msra.mxu0 0.0
    %816 = vmatprep.subr.mxu0 0.0
    %817 = vmatpush1.msra.mxu0 0.0
    %818 = vmatprep.subr.mxu0 0.0
    %819 = vmatpush1.msra.mxu0 0.0
    %820 = vmatprep.subr.mxu0 0.0
    %821 = vmatpush1.msra.mxu0 0.0
    %822 = vmatprep.subr.mxu0 0.0
    %823 = vmatpush1.msra.mxu0 0.0
    %824 = vmatprep.subr.mxu0 0.0
    %825 = vmatpush1.msra.mxu0 0.0
    %826 = vmatprep.subr.mxu0 0.0
    %827 = vmatpush1.msra.mxu0 0.0
    %828 = vmatprep.subr.mxu0 0.0
    %829 = vmatpush1.msra.mxu0 0.0
    %830 = vmatprep.subr.mxu0 0.0
    %831 = vmatpush1.msra.mxu0 0.0
    %832 = vmatprep.subr.mxu0 0.0
    %833 = vmatpush1.msra.mxu0 0.0
    %834 = vmatprep.subr.mxu0 0.0
    %835 = vmatpush1.msra.mxu0 0.0
    %836 = vmatprep.subr.mxu0 0.0
    %837 = vmatpush1.msra.mxu0 0.0
    %838 = vmatprep.subr.mxu0 0.0
    %839 = vmatpush1.msra.mxu0 0.0
    %840 = vmatprep.subr.mxu0 0.0
    %841 = vmatpush1.msra.mxu0 0.0
    %842 = vmatprep.subr.mxu0 0.0
    %843 = vmatpush1.msra.mxu0 0.0
    %844 = vmatprep.subr.mxu0 0.0
    %845 = vmatpush1.msra.mxu0 0.0
    %846 = vmatprep.subr.mxu0 0.0
    %847 = vmatpush1.msra.mxu0 0.0
    %848 = vmatprep.subr.mxu0 0.0
    %849 = vmatpush1.msra.mxu0 0.0
    %850 = vmatprep.subr.mxu0 0.0
    %851 = vmatpush1.msra.mxu0 0.0
    %852 = vmatprep.subr.mxu0 0.0
    %853 = vmatpush1.msra.mxu0 0.0
    %854 = vmatprep.subr.mxu0 0.0
    %855 = vmatpush1.msra.mxu0 0.0
    %856 = vmatprep.mubr.f32.mxu0 0.0
    %857 = vmatmul.mubr.f32.gmra.mrb[0].mxu0 %v787
    %v858 = vpop.f32.mrb[0].mxu0
    %v859 = vadd.f32 %v47, %v858
    %v860 = vpop.f32.mrb[0].mxu0
    %861 = vmatprep.mubr.f32.mxu0 0.0
    %862 = vmatmul.mubr.f32.gmra.mrb[0].mxu0 %v790
    %v863 = vpop.f32.mrb[0].mxu0
    %v864 = vadd.f32 %v48, %v863
    %v865 = vpop.f32.mrb[0].mxu0
    %866 = vdwg.mxu0
    %v867 = vadd.f32 %v859, %v701
    %v868 = vadd.f32 %v864, %v702
    %869 = vst.msk [vmem:[#allocation2] sm:$0xff] %vm49, %v867
    %870 = vst.msk [vmem:[#allocation2 + $0x8] sm:$0xff] %vm49, %v868
    // Predicated region
    $region14: #{transformer_encoder_layer.1} parent=1 // pred_check
      _
    $region15: #{transformer_encoder_layer.1} parent=1 // pred_check_branch
      %872 = sbr.rel (0) target = $region17
    $region16: #{transformer_encoder_layer.1} parent=1 // pred_region
      %s874 = ssub.s32 256, 256
      %875 = vsyncadd [#allocation3], %s874
      %s876 = sshll.u32 [#allocation2], 4
      %s877 = int_to_ptr.vmem [resolvable:$true] %s876
      %882 = dma.vmem_to_hbm [thread:$0]  %s877, 256, %s3, [#allocation3], 128, 128, 8
    $region17: #{transformer_encoder_layer.1} parent=1 // pred_fallthru
      _
    // Predicated region
    $region18: #{transformer_encoder_layer.1} parent=1 // pred_check
      _
    $region19: #{transformer_encoder_layer.1} parent=1 // pred_check_branch
      %884 = sbr.rel (0) target = $region21
    $region20: #{transformer_encoder_layer.1} parent=1 // pred_region
      %885 = dma.done [#allocation3], 256
    $region21: #{transformer_encoder_layer.1} parent=1 // pred_fallthru
      _
    %886 = vsyncpa [#allocation3], 1

</llo_original>
